<compile_context>
chip_gen: v7x
topology: tpu7x:2x2x1
jax: 0.10.0
libtpu: 0.0.40
codegen_flags: <defaults>
</compile_context>

<pallas_src>
import jax
import jax.numpy as jnp
from jax.experimental import pallas as pl
from jax.experimental.pallas import tpu as pltpu


def _round_up(x: int, m: int) -> int:
    return ((x + m - 1) // m) * m


def _gather_kernel(idx_ref, table_ref, out_ref, acc_ref, iota_ref):
    # idx_ref:   (bt, 1)          int32 -- positions for this output row block
    # table_ref: (chunk_s, edp)   f32   -- current seq_len chunk of the table
    # out_ref:   (bt, edp)        f32
    # acc_ref:   (bt, edp)        f32   -- accumulator across seq_len chunks
    # iota_ref:  (bt, chunk_s)    int32 -- lane-axis iota, built once per block
    s = pl.program_id(1)
    chunk_s = table_ref.shape[0]

    @pl.when(s == 0)
    def _init():
        iota_ref[...] = jax.lax.broadcasted_iota(jnp.int32, iota_ref.shape, 1)
        acc_ref[...] = jnp.zeros_like(acc_ref)

    # one_hot[t, k] = (k + s*chunk_s == idx[t]); lane-dense (bt, chunk_s).
    local_idx = idx_ref[...] - s * chunk_s                       # (bt, 1)
    one_hot = (iota_ref[...] == local_idx).astype(table_ref.dtype)

    # Canonical (M,K)x(K,N): feeds the MXU directly, accumulate in f32.
    acc_ref[...] += jnp.dot(one_hot, table_ref[...],
                            preferred_element_type=jnp.float32)

    @pl.when(s == pl.num_programs(1) - 1)
    def _finalize():
        out_ref[...] = acc_ref[...].astype(out_ref.dtype)


def learned_positional_encode(idxs: jax.Array, table: jax.Array,
                              *, block_t: int = 256) -> jax.Array:
    """idxs: (T,) int, table: (seq_len, emb_dim) -> (T, emb_dim)."""
    assert idxs.ndim == 1, "Expected a single dimension for the input tensor"
    T = idxs.shape[0]
    seq_len, emb_dim = table.shape
    itemsize = jnp.dtype(table.dtype).itemsize

    # 128-aligned tiling (lane-dense one-hot / output, full MXU tiles).
    ed_pad = _round_up(emb_dim, 128)
    sl_pad = _round_up(seq_len, 128)
    bt = min(_round_up(block_t, 128), _round_up(T, 128))
    t_pad = _round_up(T, bt)
    num_blocks = t_pad // bt

    # Generation-aware VMEM budget (v5e/v6e: 128 MiB physical, v7x: 64 MiB).
    try:
        vmem_cap = int(pltpu.get_tpu_info().vmem_capacity_bytes)
    except Exception:
        vmem_cap = 64 << 20  # conservative fallback (v7x-sized)
    vmem_budget = int(vmem_cap * 0.85)

    def vmem_need(chunk_s: int, num_chunks: int) -> int:
        table_bufs = 1 if num_chunks == 1 else 2  # Buffered(1) when invariant
        return (
            table_bufs * chunk_s * ed_pad * itemsize   # table chunk(s)
            + 2 * bt * ed_pad * itemsize               # output tile (2 bufs)
            + bt * ed_pad * 4                          # f32 accumulator scratch
            + bt * chunk_s * 4                         # iota scratch (int32)
            + bt * chunk_s * itemsize                  # one-hot intermediate
            + 2 * bt * 128 * 4                         # idx column tiles
            + (2 << 20)                                # headroom
        )

    # Largest seq_len chunk (multiple of 128, dividing sl_pad) fitting VMEM.
    n_units = sl_pad // 128
    chunk_s = num_chunks = None
    for nc in range(1, n_units + 1):
        if n_units % nc:
            continue
        cs = (n_units // nc) * 128
        if vmem_need(cs, nc) <= vmem_budget:
            chunk_s, num_chunks = cs, nc
            break
    assert chunk_s is not None, (
        "Embedding table too large for the chunked one-hot gather on this "
        "generation; use a scalar-prefetch row gather instead."
    )

    # Pad inputs. Padded index rows read row 0 (always valid) and are sliced
    # off; padded table rows/cols are zero and never selected / sliced off.
    idxs_col = jnp.pad(idxs.astype(jnp.int32), (0, t_pad - T)).reshape(t_pad, 1)
    table_p = jnp.pad(table, ((0, sl_pad - seq_len), (0, ed_pad - emb_dim)))

    if num_chunks == 1:
        # Grid-invariant table: single-buffer it (never re-fetched).
        table_spec = pl.BlockSpec((chunk_s, ed_pad), lambda i, s: (0, 0),
                                  pipeline_mode=pl.Buffered(1))
    else:
        table_spec = pl.BlockSpec((chunk_s, ed_pad), lambda i, s: (s, 0))

    grid_spec = pltpu.PrefetchScalarGridSpec(
        num_scalar_prefetch=0,
        grid=(num_blocks, num_chunks),          # reduction (seq chunks) last
        in_specs=[
            pl.BlockSpec((bt, 1), lambda i, s: (i, 0)),   # idx column
            table_spec,
        ],
        out_specs=pl.BlockSpec((bt, ed_pad), lambda i, s: (i, 0)),
        scratch_shapes=[
            pltpu.VMEM((bt, ed_pad), jnp.float32),   # accumulator
            pltpu.VMEM((bt, chunk_s), jnp.int32),    # lane-axis iota
        ],
    )

    compiler_kwargs = dict(
        dimension_semantics=(
            "parallel" if num_blocks > 1 else "arbitrary",  # avoid 2x table DMA
            "arbitrary",                                    # seq_len reduction
        ),
    )
    need = vmem_need(chunk_s, num_chunks)
    if need > (16 << 20):  # above the most conservative default scoped limit
        compiler_kwargs["vmem_limit_bytes"] = int(min(need + (4 << 20), vmem_budget))

    out = pl.pallas_call(
        _gather_kernel,
        out_shape=jax.ShapeDtypeStruct((t_pad, ed_pad), table.dtype),
        grid_spec=grid_spec,
        compiler_params=pltpu.CompilerParams(**compiler_kwargs),
    )(idxs_col, table_p)

    return out[:T, :emb_dim]


if __name__ == "__main__":
    # Module hyper-params (small, consistent with the forward pass).
    seq_len = 16
    emb_dim = 32
    T = 8

    key = jax.random.PRNGKey(0)
    k_table, k_idx = jax.random.split(key)

    # Deterministic parameter init: nn.Embedding default is N(0, 1).
    table = jax.random.normal(k_table, (seq_len, emb_dim), dtype=jnp.float32)
    # 1-D index tensor with arbitrary valid positions.
    idxs = jax.random.randint(k_idx, (T,), 0, seq_len, dtype=jnp.int32)

    out = learned_positional_encode(idxs, table)
    out = jax.block_until_ready(out)

    # Sanity check against plain-JAX gather (same semantics as torch embedding).
    ref = table[idxs]
    assert out.shape == (T, emb_dim)
    assert jnp.allclose(out, ref), "Pallas gather mismatch vs reference"

    print("KERNEL_OK")
</pallas_src>

<mosaic_0001>
module attributes {stable_mosaic.version = 11 : i64} {
  func.func @_gather_kernel(%arg0: i32, %arg1: i32, %arg2: memref<128x1xi32, #tpu.memory_space<vmem>>, %arg3: memref<128x128xf32, #tpu.memory_space<vmem>>, %arg4: memref<128x128xf32, #tpu.memory_space<vmem>>, %arg5: memref<128x128xf32, #tpu.memory_space<vmem>>, %arg6: memref<128x128xi32, #tpu.memory_space<vmem>>) attributes {dimension_semantics = [#tpu.dimension_semantics<arbitrary>, #tpu.dimension_semantics<arbitrary>], iteration_bounds = array<i64: 1, 1>, scalar_prefetch = 0 : i64, scratch_operands = 2 : i64, tpu.core_type = #tpu.core_type<tc>, window_params = [{transform_indices = @transform_0, window_bounds = array<i64: 128, 1>}, {pipeline_mode = #tpu.pipeline_mode<synchronous>, transform_indices = @transform_1, window_bounds = array<i64: 128, 128>}, {transform_indices = @transform_2, window_bounds = array<i64: 128, 128>}]} {
    %c0_i32 = arith.constant 0 : i32
    %0 = arith.cmpi eq, %arg1, %c0_i32 : i32
    %1 = arith.extui %0 : i1 to i32
    %c0_i32_0 = arith.constant 0 : i32
    %2 = arith.cmpi ne, %1, %c0_i32_0 : i32
    scf.if %2 {
      %20 = tpu.iota {dimensions = array<i32: 1>} : vector<128x128xi32>
      %c0_12 = arith.constant 0 : index
      %c0_13 = arith.constant 0 : index
      %21 = vector.load %arg6[%c0_12, %c0_13] : memref<128x128xi32, #tpu.memory_space<vmem>>, vector<128x128xi32>
      tpu.vector_store %arg6[%c0_12, %c0_13], %20 {strides = array<i32>} : memref<128x128xi32, #tpu.memory_space<vmem>>, vector<128x128xi32>,
      %cst_14 = arith.constant 0.000000e+00 : f32
      %22 = vector.broadcast %cst_14 : f32 to vector<128x128xf32>
      %c0_15 = arith.constant 0 : index
      %c0_16 = arith.constant 0 : index
      %23 = vector.load %arg5[%c0_15, %c0_16] : memref<128x128xf32, #tpu.memory_space<vmem>>, vector<128x128xf32>
      tpu.vector_store %arg5[%c0_15, %c0_16], %22 {strides = array<i32>} : memref<128x128xf32, #tpu.memory_space<vmem>>, vector<128x128xf32>,
    } else {
    }
    %c0 = arith.constant 0 : index
    %c0_1 = arith.constant 0 : index
    %3 = vector.load %arg2[%c0, %c0_1] : memref<128x1xi32, #tpu.memory_space<vmem>>, vector<128x1xi32>
    %c128_i32 = arith.constant 128 : i32
    %4 = arith.muli %arg1, %c128_i32 : i32
    %5 = vector.broadcast %4 : i32 to vector<128x1xi32>
    %6 = arith.subi %3, %5 : vector<128x1xi32>
    %c0_2 = arith.constant 0 : index
    %c0_3 = arith.constant 0 : index
    %7 = vector.load %arg6[%c0_2, %c0_3] : memref<128x128xi32, #tpu.memory_space<vmem>>, vector<128x128xi32>
    %8 = vector.broadcast %6 : vector<128x1xi32> to vector<128x128xi32>
    %9 = arith.cmpi eq, %7, %8 : vector<128x128xi32>
    %10 = arith.extui %9 : vector<128x128xi1> to vector<128x128xi32>
    %11 = arith.sitofp %10 : vector<128x128xi32> to vector<128x128xf32>
    %c0_4 = arith.constant 0 : index
    %c0_5 = arith.constant 0 : index
    %12 = vector.load %arg5[%c0_4, %c0_5] : memref<128x128xf32, #tpu.memory_space<vmem>>, vector<128x128xf32>
    %c0_6 = arith.constant 0 : index
    %c0_7 = arith.constant 0 : index
    %13 = vector.load %arg3[%c0_6, %c0_7] : memref<128x128xf32, #tpu.memory_space<vmem>>, vector<128x128xf32>
    %cst = arith.constant dense<0.000000e+00> : vector<128x128xf32>
    %14 = tpu.matmul %11, %13, %cst {dimension_numbers = #tpu.dot_dimension_numbers<[1], [0], [0], [1], [0, 0, 1, 1], [], []>} : vector<128x128xf32>, vector<128x128xf32>, vector<128x128xf32> -> vector<128x128xf32>
    %15 = arith.addf %12, %14 : vector<128x128xf32>
    %c0_8 = arith.constant 0 : index
    %c0_9 = arith.constant 0 : index
    %16 = vector.load %arg5[%c0_8, %c0_9] : memref<128x128xf32, #tpu.memory_space<vmem>>, vector<128x128xf32>
    tpu.vector_store %arg5[%c0_8, %c0_9], %15 {strides = array<i32>} : memref<128x128xf32, #tpu.memory_space<vmem>>, vector<128x128xf32>,
    %c0_i32_10 = arith.constant 0 : i32
    %17 = arith.cmpi eq, %arg1, %c0_i32_10 : i32
    %18 = arith.extui %17 : i1 to i32
    %c0_i32_11 = arith.constant 0 : i32
    %19 = arith.cmpi ne, %18, %c0_i32_11 : i32
    scf.if %19 {
      %c0_12 = arith.constant 0 : index
      %c0_13 = arith.constant 0 : index
      %20 = vector.load %arg5[%c0_12, %c0_13] : memref<128x128xf32, #tpu.memory_space<vmem>>, vector<128x128xf32>
      %c0_14 = arith.constant 0 : index
      %c0_15 = arith.constant 0 : index
      %21 = vector.load %arg4[%c0_14, %c0_15] : memref<128x128xf32, #tpu.memory_space<vmem>>, vector<128x128xf32>
      tpu.vector_store %arg4[%c0_14, %c0_15], %20 {strides = array<i32>} : memref<128x128xf32, #tpu.memory_space<vmem>>, vector<128x128xf32>,
    } else {
    }
    return
  }
  func.func @transform_0(%arg0: i32, %arg1: i32) -> (i32, i32) {
    %c0_i32 = arith.constant 0 : i32
    %c0_i32_0 = arith.constant 0 : i32
    return %arg0, %c0_i32 : i32, i32
  }
  func.func @transform_1(%arg0: i32, %arg1: i32) -> (i32, i32) {
    %c0_i32 = arith.constant 0 : i32
    %c0_i32_0 = arith.constant 0 : i32
    %c0_i32_1 = arith.constant 0 : i32
    return %c0_i32, %c0_i32_0 : i32, i32
  }
  func.func @transform_2(%arg0: i32, %arg1: i32) -> (i32, i32) {
    %c0_i32 = arith.constant 0 : i32
    %c0_i32_0 = arith.constant 0 : i32
    return %arg0, %c0_i32 : i32, i32
  }
}

</mosaic_0001>

<llo_original>
// kernel: tpu_custom_call.1
$region0: #{tpu_custom_call.1}
  #allocation0 [shape = 'u32[]', space=smem, size = 0x4, offset = 0x4, fixed_abs, tag = 'smem constant byte address 0x4 - core index']
  #allocation1 [shape = 'u32[144,128]{1,0:T(1,128)}', space=vmem, size = 0x12000, scoped, tag = 'internal scratch']
  #allocation2 [shape = 'f32[128,128]{1,0:T(8,128)}', space=vmem, size = 0x10000, scoped, tag = 'scratch operand']
  #allocation3 [shape = 's32[128,128]{1,0:T(8,128)}', space=vmem, size = 0x10000, scoped, tag = 'scratch operand']
  %s0 = inlined_call_operand.vmem [shape: s32[128,1], index: 0, kind: input, shape index: {}]
  %s1 = inlined_call_operand.vmem [shape: f32[128,128], index: 1, kind: input, shape index: {}]
  %s2 = inlined_call_operand.hbm [shape: f32[128,128], index: 2, kind: output, shape index: {}]
  %s3 = sld [smem:[#allocation0]]
  $region26: #{tpu_custom_call.1} parent=0
    _
  %s5 = ssub.s32 1, %s3
  %s6 = scalar_select 0, %s5, %s3
  $region1: #{tpu_custom_call.1} parent=0
    #allocation4 [shape = 'u8[65536]{0}', space=vmem, size = 0x10000, scoped, tag = 'output window, operand 0, single buffered']
    #allocation5 [shape = 's32[1]{0}', space=sflag, size = 0x4, scoped, tag = 'scoped memory for tpu_custom_call.1']
    %7 = vsyncpa [#allocation5], 0
    // Predicated region
    $region2: #{tpu_custom_call.1} parent=1 // pred_check
      _
    $region3: #{tpu_custom_call.1} parent=1 // pred_check_branch
      %9 = sbr.rel (0) target = $region5
    $region4: #{tpu_custom_call.1} parent=1 // pred_region
      _
    $region5: #{tpu_custom_call.1} parent=1 // pred_fallthru
      _
    // Predicated region
    $region6: #{tpu_custom_call.1} parent=1 // pred_check
      _
    $region7: #{tpu_custom_call.1} parent=1 // pred_check_branch
      %11 = sbr.rel (0) target = $region9
    $region8: #{tpu_custom_call.1} parent=1 // pred_region
      _
    $region9: #{tpu_custom_call.1} parent=1 // pred_fallthru
      _
    %p12 = scmp.eq.s32.totalorder 0, 0
    // Predicated region
    $region10: #{tpu_custom_call.1} parent=1 // pred_check
      %p13 = pneg %p12
    $region11: #{tpu_custom_call.1} parent=1 // pred_check_branch
      %15 = sbr.rel (%p13) target = $region13
    $region12: #{tpu_custom_call.1} parent=1 // pred_region
      %v16 = vlaneseq
      %v17 = vand.u32 %v16, 127
      %18 = vst [vmem:[#allocation3] sm:$0xff] %v17
      %19 = vst [vmem:[#allocation3 + $0x8] sm:$0xff] %v17
      %20 = vst [vmem:[#allocation3 + $0x10] sm:$0xff] %v17
      %21 = vst [vmem:[#allocation3 + $0x18] sm:$0xff] %v17
      %22 = vst [vmem:[#allocation3 + $0x20] sm:$0xff] %v17
      %23 = vst [vmem:[#allocation3 + $0x28] sm:$0xff] %v17
      %24 = vst [vmem:[#allocation3 + $0x30] sm:$0xff] %v17
      %25 = vst [vmem:[#allocation3 + $0x38] sm:$0xff] %v17
      %26 = vst [vmem:[#allocation3 + $0x40] sm:$0xff] %v17
      %27 = vst [vmem:[#allocation3 + $0x48] sm:$0xff] %v17
      %28 = vst [vmem:[#allocation3 + $0x50] sm:$0xff] %v17
      %29 = vst [vmem:[#allocation3 + $0x58] sm:$0xff] %v17
      %30 = vst [vmem:[#allocation3 + $0x60] sm:$0xff] %v17
      %31 = vst [vmem:[#allocation3 + $0x68] sm:$0xff] %v17
      %32 = vst [vmem:[#allocation3 + $0x70] sm:$0xff] %v17
      %33 = vst [vmem:[#allocation3 + $0x78] sm:$0xff] %v17
      %34 = vst [vmem:[#allocation2] sm:$0xff] 0.0
      %35 = vst [vmem:[#allocation2 + $0x8] sm:$0xff] 0.0
      %36 = vst [vmem:[#allocation2 + $0x10] sm:$0xff] 0.0
      %37 = vst [vmem:[#allocation2 + $0x18] sm:$0xff] 0.0
      %38 = vst [vmem:[#allocation2 + $0x20] sm:$0xff] 0.0
      %39 = vst [vmem:[#allocation2 + $0x28] sm:$0xff] 0.0
      %40 = vst [vmem:[#allocation2 + $0x30] sm:$0xff] 0.0
      %41 = vst [vmem:[#allocation2 + $0x38] sm:$0xff] 0.0
      %42 = vst [vmem:[#allocation2 + $0x40] sm:$0xff] 0.0
      %43 = vst [vmem:[#allocation2 + $0x48] sm:$0xff] 0.0
      %44 = vst [vmem:[#allocation2 + $0x50] sm:$0xff] 0.0
      %45 = vst [vmem:[#allocation2 + $0x58] sm:$0xff] 0.0
      %46 = vst [vmem:[#allocation2 + $0x60] sm:$0xff] 0.0
      %47 = vst [vmem:[#allocation2 + $0x68] sm:$0xff] 0.0
      %48 = vst [vmem:[#allocation2 + $0x70] sm:$0xff] 0.0
      %49 = vst [vmem:[#allocation2 + $0x78] sm:$0xff] 0.0
    $region13: #{tpu_custom_call.1} parent=1 // pred_fallthru
      _
    %v50 = vld [vmem:[%s0] sm:$0xff]
    %v51 = vld [vmem:[%s0 + $0x8] sm:$0xff]
    %v52 = vld [vmem:[%s0 + $0x10] sm:$0xff]
    %v53 = vld [vmem:[%s0 + $0x18] sm:$0xff]
    %v54 = vld [vmem:[%s0 + $0x20] sm:$0xff]
    %v55 = vld [vmem:[%s0 + $0x28] sm:$0xff]
    %v56 = vld [vmem:[%s0 + $0x30] sm:$0xff]
    %v57 = vld [vmem:[%s0 + $0x38] sm:$0xff]
    %v58 = vld [vmem:[%s0 + $0x40] sm:$0xff]
    %v59 = vld [vmem:[%s0 + $0x48] sm:$0xff]
    %v60 = vld [vmem:[%s0 + $0x50] sm:$0xff]
    %v61 = vld [vmem:[%s0 + $0x58] sm:$0xff]
    %v62 = vld [vmem:[%s0 + $0x60] sm:$0xff]
    %v63 = vld [vmem:[%s0 + $0x68] sm:$0xff]
    %v64 = vld [vmem:[%s0 + $0x70] sm:$0xff]
    %v65 = vld [vmem:[%s0 + $0x78] sm:$0xff]
    %s66 = smul.u32 0, 128
    %v67 = vstv %s66
    %v68 = vsub.s32 %v50, %v67
    %v69 = vsub.s32 %v51, %v67
    %v70 = vsub.s32 %v52, %v67
    %v71 = vsub.s32 %v53, %v67
    %v72 = vsub.s32 %v54, %v67
    %v73 = vsub.s32 %v55, %v67
    %v74 = vsub.s32 %v56, %v67
    %v75 = vsub.s32 %v57, %v67
    %v76 = vsub.s32 %v58, %v67
    %v77 = vsub.s32 %v59, %v67
    %v78 = vsub.s32 %v60, %v67
    %v79 = vsub.s32 %v61, %v67
    %v80 = vsub.s32 %v62, %v67
    %v81 = vsub.s32 %v63, %v67
    %v82 = vsub.s32 %v64, %v67
    %v83 = vsub.s32 %v65, %v67
    %v84 = vld [vmem:[#allocation3] sm:$0xff]
    %v85 = vld [vmem:[#allocation3 + $0x8] sm:$0xff]
    %v86 = vld [vmem:[#allocation3 + $0x10] sm:$0xff]
    %v87 = vld [vmem:[#allocation3 + $0x18] sm:$0xff]
    %v88 = vld [vmem:[#allocation3 + $0x20] sm:$0xff]
    %v89 = vld [vmem:[#allocation3 + $0x28] sm:$0xff]
    %v90 = vld [vmem:[#allocation3 + $0x30] sm:$0xff]
    %v91 = vld [vmem:[#allocation3 + $0x38] sm:$0xff]
    %v92 = vld [vmem:[#allocation3 + $0x40] sm:$0xff]
    %v93 = vld [vmem:[#allocation3 + $0x48] sm:$0xff]
    %v94 = vld [vmem:[#allocation3 + $0x50] sm:$0xff]
    %v95 = vld [vmem:[#allocation3 + $0x58] sm:$0xff]
    %v96 = vld [vmem:[#allocation3 + $0x60] sm:$0xff]
    %v97 = vld [vmem:[#allocation3 + $0x68] sm:$0xff]
    %v98 = vld [vmem:[#allocation3 + $0x70] sm:$0xff]
    %v99 = vld [vmem:[#allocation3 + $0x78] sm:$0xff]
    %100 = vset.pattern.permute.xlu0 0
    %101 = vperm.xlu0 %100, %v68
    %v102 = vpop.permute.xlu0 %101
    %103 = vset.pattern.permute.xlu0 0
    %104 = vperm.xlu0 %103, %v69
    %v105 = vpop.permute.xlu0 %104
    %106 = vset.pattern.permute.xlu0 0
    %107 = vperm.xlu0 %106, %v70
    %v108 = vpop.permute.xlu0 %107
    %109 = vset.pattern.permute.xlu0 0
    %110 = vperm.xlu0 %109, %v71
    %v111 = vpop.permute.xlu0 %110
    %112 = vset.pattern.permute.xlu0 0
    %113 = vperm.xlu0 %112, %v72
    %v114 = vpop.permute.xlu0 %113
    %115 = vset.pattern.permute.xlu0 0
    %116 = vperm.xlu0 %115, %v73
    %v117 = vpop.permute.xlu0 %116
    %118 = vset.pattern.permute.xlu0 0
    %119 = vperm.xlu0 %118, %v74
    %v120 = vpop.permute.xlu0 %119
    %121 = vset.pattern.permute.xlu0 0
    %122 = vperm.xlu0 %121, %v75
    %v123 = vpop.permute.xlu0 %122
    %124 = vset.pattern.permute.xlu0 0
    %125 = vperm.xlu0 %124, %v76
    %v126 = vpop.permute.xlu0 %125
    %127 = vset.pattern.permute.xlu0 0
    %128 = vperm.xlu0 %127, %v77
    %v129 = vpop.permute.xlu0 %128
    %130 = vset.pattern.permute.xlu0 0
    %131 = vperm.xlu0 %130, %v78
    %v132 = vpop.permute.xlu0 %131
    %133 = vset.pattern.permute.xlu0 0
    %134 = vperm.xlu0 %133, %v79
    %v135 = vpop.permute.xlu0 %134
    %136 = vset.pattern.permute.xlu0 0
    %137 = vperm.xlu0 %136, %v80
    %v138 = vpop.permute.xlu0 %137
    %139 = vset.pattern.permute.xlu0 0
    %140 = vperm.xlu0 %139, %v81
    %v141 = vpop.permute.xlu0 %140
    %142 = vset.pattern.permute.xlu0 0
    %143 = vperm.xlu0 %142, %v82
    %v144 = vpop.permute.xlu0 %143
    %145 = vset.pattern.permute.xlu0 0
    %146 = vperm.xlu0 %145, %v83
    %v147 = vpop.permute.xlu0 %146
    %vm148 = vcmp.eq.s32.totalorder %v84, %v102
    %vm149 = vcmp.eq.s32.totalorder %v85, %v105
    %vm150 = vcmp.eq.s32.totalorder %v86, %v108
    %vm151 = vcmp.eq.s32.totalorder %v87, %v111
    %vm152 = vcmp.eq.s32.totalorder %v88, %v114
    %vm153 = vcmp.eq.s32.totalorder %v89, %v117
    %vm154 = vcmp.eq.s32.totalorder %v90, %v120
    %vm155 = vcmp.eq.s32.totalorder %v91, %v123
    %vm156 = vcmp.eq.s32.totalorder %v92, %v126
    %vm157 = vcmp.eq.s32.totalorder %v93, %v129
    %vm158 = vcmp.eq.s32.totalorder %v94, %v132
    %vm159 = vcmp.eq.s32.totalorder %v95, %v135
    %vm160 = vcmp.eq.s32.totalorder %v96, %v138
    %vm161 = vcmp.eq.s32.totalorder %v97, %v141
    %vm162 = vcmp.eq.s32.totalorder %v98, %v144
    %vm163 = vcmp.eq.s32.totalorder %v99, %v147
    %v164 = vsel %vm148, 1, 0
    %v165 = vsel %vm149, 1, 0
    %v166 = vsel %vm150, 1, 0
    %v167 = vsel %vm151, 1, 0
    %v168 = vsel %vm152, 1, 0
    %v169 = vsel %vm153, 1, 0
    %v170 = vsel %vm154, 1, 0
    %v171 = vsel %vm155, 1, 0
    %v172 = vsel %vm156, 1, 0
    %v173 = vsel %vm157, 1, 0
    %v174 = vsel %vm158, 1, 0
    %v175 = vsel %vm159, 1, 0
    %v176 = vsel %vm160, 1, 0
    %v177 = vsel %vm161, 1, 0
    %v178 = vsel %vm162, 1, 0
    %v179 = vsel %vm163, 1, 0
    %v180 = vcvt.s32.f32 %v164
    %v181 = vcvt.s32.f32 %v165
    %v182 = vcvt.s32.f32 %v166
    %v183 = vcvt.s32.f32 %v167
    %v184 = vcvt.s32.f32 %v168
    %v185 = vcvt.s32.f32 %v169
    %v186 = vcvt.s32.f32 %v170
    %v187 = vcvt.s32.f32 %v171
    %v188 = vcvt.s32.f32 %v172
    %v189 = vcvt.s32.f32 %v173
    %v190 = vcvt.s32.f32 %v174
    %v191 = vcvt.s32.f32 %v175
    %v192 = vcvt.s32.f32 %v176
    %v193 = vcvt.s32.f32 %v177
    %v194 = vcvt.s32.f32 %v178
    %v195 = vcvt.s32.f32 %v179
    %v196 = vld [vmem:[#allocation2] sm:$0xff]
    %v197 = vld [vmem:[#allocation2 + $0x8] sm:$0xff]
    %v198 = vld [vmem:[#allocation2 + $0x10] sm:$0xff]
    %v199 = vld [vmem:[#allocation2 + $0x18] sm:$0xff]
    %v200 = vld [vmem:[#allocation2 + $0x20] sm:$0xff]
    %v201 = vld [vmem:[#allocation2 + $0x28] sm:$0xff]
    %v202 = vld [vmem:[#allocation2 + $0x30] sm:$0xff]
    %v203 = vld [vmem:[#allocation2 + $0x38] sm:$0xff]
    %v204 = vld [vmem:[#allocation2 + $0x40] sm:$0xff]
    %v205 = vld [vmem:[#allocation2 + $0x48] sm:$0xff]
    %v206 = vld [vmem:[#allocation2 + $0x50] sm:$0xff]
    %v207 = vld [vmem:[#allocation2 + $0x58] sm:$0xff]
    %v208 = vld [vmem:[#allocation2 + $0x60] sm:$0xff]
    %v209 = vld [vmem:[#allocation2 + $0x68] sm:$0xff]
    %v210 = vld [vmem:[#allocation2 + $0x70] sm:$0xff]
    %v211 = vld [vmem:[#allocation2 + $0x78] sm:$0xff]
    %v212 = vld [vmem:[%s1] sm:$0xff]
    %v213 = vld [vmem:[%s1 + $0x8] sm:$0xff]
    %v214 = vld [vmem:[%s1 + $0x10] sm:$0xff]
    %v215 = vld [vmem:[%s1 + $0x18] sm:$0xff]
    %v216 = vld [vmem:[%s1 + $0x20] sm:$0xff]
    %v217 = vld [vmem:[%s1 + $0x28] sm:$0xff]
    %v218 = vld [vmem:[%s1 + $0x30] sm:$0xff]
    %v219 = vld [vmem:[%s1 + $0x38] sm:$0xff]
    %v220 = vld [vmem:[%s1 + $0x40] sm:$0xff]
    %v221 = vld [vmem:[%s1 + $0x48] sm:$0xff]
    %v222 = vld [vmem:[%s1 + $0x50] sm:$0xff]
    %v223 = vld [vmem:[%s1 + $0x58] sm:$0xff]
    %v224 = vld [vmem:[%s1 + $0x60] sm:$0xff]
    %v225 = vld [vmem:[%s1 + $0x68] sm:$0xff]
    %v226 = vld [vmem:[%s1 + $0x70] sm:$0xff]
    %v227 = vld [vmem:[%s1 + $0x78] sm:$0xff]
    %228 = vmatprep.subr.mxu0 0.0
    %229 = vmatpush1.msra.mxu0 %v212
    %230 = vmatprep.subr.mxu0 0.0
    %231 = vmatpush1.msra.mxu0 %v213
    %232 = vmatprep.subr.mxu0 0.0
    %233 = vmatpush1.msra.mxu0 %v214
    %234 = vmatprep.subr.mxu0 0.0
    %235 = vmatpush1.msra.mxu0 %v215
    %236 = vmatprep.subr.mxu0 0.0
    %237 = vmatpush1.msra.mxu0 %v216
    %238 = vmatprep.subr.mxu0 0.0
    %239 = vmatpush1.msra.mxu0 %v217
    %240 = vmatprep.subr.mxu0 0.0
    %241 = vmatpush1.msra.mxu0 %v218
    %242 = vmatprep.subr.mxu0 0.0
    %243 = vmatpush1.msra.mxu0 %v219
    %244 = vmatprep.subr.mxu0 0.0
    %245 = vmatpush1.msra.mxu0 %v220
    %246 = vmatprep.subr.mxu0 0.0
    %247 = vmatpush1.msra.mxu0 %v221
    %248 = vmatprep.subr.mxu0 0.0
    %249 = vmatpush1.msra.mxu0 %v222
    %250 = vmatprep.subr.mxu0 0.0
    %251 = vmatpush1.msra.mxu0 %v223
    %252 = vmatprep.subr.mxu0 0.0
    %253 = vmatpush1.msra.mxu0 %v224
    %254 = vmatprep.subr.mxu0 0.0
    %255 = vmatpush1.msra.mxu0 %v225
    %256 = vmatprep.subr.mxu0 0.0
    %257 = vmatpush1.msra.mxu0 %v226
    %258 = vmatprep.subr.mxu0 0.0
    %259 = vmatpush1.msra.mxu0 %v227
    %260 = vmatprep.subr.mxu0 0.0
    %261 = vmatpush1.msra.mxu0 0.0
    %262 = vmatprep.subr.mxu0 0.0
    %263 = vmatpush1.msra.mxu0 0.0
    %264 = vmatprep.subr.mxu0 0.0
    %265 = vmatpush1.msra.mxu0 0.0
    %266 = vmatprep.subr.mxu0 0.0
    %267 = vmatpush1.msra.mxu0 0.0
    %268 = vmatprep.subr.mxu0 0.0
    %269 = vmatpush1.msra.mxu0 0.0
    %270 = vmatprep.subr.mxu0 0.0
    %271 = vmatpush1.msra.mxu0 0.0
    %272 = vmatprep.subr.mxu0 0.0
    %273 = vmatpush1.msra.mxu0 0.0
    %274 = vmatprep.subr.mxu0 0.0
    %275 = vmatpush1.msra.mxu0 0.0
    %276 = vmatprep.subr.mxu0 0.0
    %277 = vmatpush1.msra.mxu0 0.0
    %278 = vmatprep.subr.mxu0 0.0
    %279 = vmatpush1.msra.mxu0 0.0
    %280 = vmatprep.subr.mxu0 0.0
    %281 = vmatpush1.msra.mxu0 0.0
    %282 = vmatprep.subr.mxu0 0.0
    %283 = vmatpush1.msra.mxu0 0.0
    %284 = vmatprep.subr.mxu0 0.0
    %285 = vmatpush1.msra.mxu0 0.0
    %286 = vmatprep.subr.mxu0 0.0
    %287 = vmatpush1.msra.mxu0 0.0
    %288 = vmatprep.subr.mxu0 0.0
    %289 = vmatpush1.msra.mxu0 0.0
    %290 = vmatprep.subr.mxu0 0.0
    %291 = vmatpush1.msra.mxu0 0.0
    %292 = vmatprep.mubr.f32.mxu0 0.0
    %293 = vmatmul.mubr.f32.gmra.mrb[0].mxu0 %v180
    %v294 = vpop.f32.mrb[0].mxu0
    %v295 = vadd.f32 0.0, %v294
    %v296 = vpop.f32.mrb[0].mxu0
    %297 = vmatprep.mubr.f32.mxu0 0.0
    %298 = vmatmul.mubr.f32.gmra.mrb[0].mxu0 %v181
    %v299 = vpop.f32.mrb[0].mxu0
    %v300 = vadd.f32 0.0, %v299
    %v301 = vpop.f32.mrb[0].mxu0
    %302 = vmatprep.mubr.f32.mxu0 0.0
    %303 = vmatmul.mubr.f32.gmra.mrb[0].mxu0 %v182
    %v304 = vpop.f32.mrb[0].mxu0
    %v305 = vadd.f32 0.0, %v304
    %v306 = vpop.f32.mrb[0].mxu0
    %307 = vmatprep.mubr.f32.mxu0 0.0
    %308 = vmatmul.mubr.f32.gmra.mrb[0].mxu0 %v183
    %v309 = vpop.f32.mrb[0].mxu0
    %v310 = vadd.f32 0.0, %v309
    %v311 = vpop.f32.mrb[0].mxu0
    %312 = vmatprep.mubr.f32.mxu0 0.0
    %313 = vmatmul.mubr.f32.gmra.mrb[0].mxu0 %v184
    %v314 = vpop.f32.mrb[0].mxu0
    %v315 = vadd.f32 0.0, %v314
    %v316 = vpop.f32.mrb[0].mxu0
    %317 = vmatprep.mubr.f32.mxu0 0.0
    %318 = vmatmul.mubr.f32.gmra.mrb[0].mxu0 %v185
    %v319 = vpop.f32.mrb[0].mxu0
    %v320 = vadd.f32 0.0, %v319
    %v321 = vpop.f32.mrb[0].mxu0
    %322 = vmatprep.mubr.f32.mxu0 0.0
    %323 = vmatmul.mubr.f32.gmra.mrb[0].mxu0 %v186
    %v324 = vpop.f32.mrb[0].mxu0
    %v325 = vadd.f32 0.0, %v324
    %v326 = vpop.f32.mrb[0].mxu0
    %327 = vmatprep.mubr.f32.mxu0 0.0
    %328 = vmatmul.mubr.f32.gmra.mrb[0].mxu0 %v187
    %v329 = vpop.f32.mrb[0].mxu0
    %v330 = vadd.f32 0.0, %v329
    %v331 = vpop.f32.mrb[0].mxu0
    %332 = vmatprep.mubr.f32.mxu0 0.0
    %333 = vmatmul.mubr.f32.gmra.mrb[0].mxu0 %v188
    %v334 = vpop.f32.mrb[0].mxu0
    %v335 = vadd.f32 0.0, %v334
    %v336 = vpop.f32.mrb[0].mxu0
    %337 = vmatprep.mubr.f32.mxu0 0.0
    %338 = vmatmul.mubr.f32.gmra.mrb[0].mxu0 %v189
    %v339 = vpop.f32.mrb[0].mxu0
    %v340 = vadd.f32 0.0, %v339
    %v341 = vpop.f32.mrb[0].mxu0
    %342 = vmatprep.mubr.f32.mxu0 0.0
    %343 = vmatmul.mubr.f32.gmra.mrb[0].mxu0 %v190
    %v344 = vpop.f32.mrb[0].mxu0
    %v345 = vadd.f32 0.0, %v344
    %v346 = vpop.f32.mrb[0].mxu0
    %347 = vmatprep.mubr.f32.mxu0 0.0
    %348 = vmatmul.mubr.f32.gmra.mrb[0].mxu0 %v191
    %v349 = vpop.f32.mrb[0].mxu0
    %v350 = vadd.f32 0.0, %v349
    %v351 = vpop.f32.mrb[0].mxu0
    %352 = vmatprep.mubr.f32.mxu0 0.0
    %353 = vmatmul.mubr.f32.gmra.mrb[0].mxu0 %v192
    %v354 = vpop.f32.mrb[0].mxu0
    %v355 = vadd.f32 0.0, %v354
    %v356 = vpop.f32.mrb[0].mxu0
    %357 = vmatprep.mubr.f32.mxu0 0.0
    %358 = vmatmul.mubr.f32.gmra.mrb[0].mxu0 %v193
    %v359 = vpop.f32.mrb[0].mxu0
    %v360 = vadd.f32 0.0, %v359
    %v361 = vpop.f32.mrb[0].mxu0
    %362 = vmatprep.mubr.f32.mxu0 0.0
    %363 = vmatmul.mubr.f32.gmra.mrb[0].mxu0 %v194
    %v364 = vpop.f32.mrb[0].mxu0
    %v365 = vadd.f32 0.0, %v364
    %v366 = vpop.f32.mrb[0].mxu0
    %367 = vmatprep.mubr.f32.mxu0 0.0
    %368 = vmatmul.mubr.f32.gmra.mrb[0].mxu0 %v195
    %v369 = vpop.f32.mrb[0].mxu0
    %v370 = vadd.f32 0.0, %v369
    %v371 = vpop.f32.mrb[0].mxu0
    %372 = vdwg.mxu0
    %v373 = vadd.f32 %v196, %v295
    %v374 = vadd.f32 %v197, %v300
    %v375 = vadd.f32 %v198, %v305
    %v376 = vadd.f32 %v199, %v310
    %v377 = vadd.f32 %v200, %v315
    %v378 = vadd.f32 %v201, %v320
    %v379 = vadd.f32 %v202, %v325
    %v380 = vadd.f32 %v203, %v330
    %v381 = vadd.f32 %v204, %v335
    %v382 = vadd.f32 %v205, %v340
    %v383 = vadd.f32 %v206, %v345
    %v384 = vadd.f32 %v207, %v350
    %v385 = vadd.f32 %v208, %v355
    %v386 = vadd.f32 %v209, %v360
    %v387 = vadd.f32 %v210, %v365
    %v388 = vadd.f32 %v211, %v370
    %389 = vst [vmem:[#allocation2] sm:$0xff] %v373
    %390 = vst [vmem:[#allocation2 + $0x8] sm:$0xff] %v374
    %391 = vst [vmem:[#allocation2 + $0x10] sm:$0xff] %v375
    %392 = vst [vmem:[#allocation2 + $0x18] sm:$0xff] %v376
    %393 = vst [vmem:[#allocation2 + $0x20] sm:$0xff] %v377
    %394 = vst [vmem:[#allocation2 + $0x28] sm:$0xff] %v378
    %395 = vst [vmem:[#allocation2 + $0x30] sm:$0xff] %v379
    %396 = vst [vmem:[#allocation2 + $0x38] sm:$0xff] %v380
    %397 = vst [vmem:[#allocation2 + $0x40] sm:$0xff] %v381
    %398 = vst [vmem:[#allocation2 + $0x48] sm:$0xff] %v382
    %399 = vst [vmem:[#allocation2 + $0x50] sm:$0xff] %v383
    %400 = vst [vmem:[#allocation2 + $0x58] sm:$0xff] %v384
    %401 = vst [vmem:[#allocation2 + $0x60] sm:$0xff] %v385
    %402 = vst [vmem:[#allocation2 + $0x68] sm:$0xff] %v386
    %403 = vst [vmem:[#allocation2 + $0x70] sm:$0xff] %v387
    %404 = vst [vmem:[#allocation2 + $0x78] sm:$0xff] %v388
    // Predicated region
    $region14: #{tpu_custom_call.1} parent=1 // pred_check
      %p405 = pneg %p12
    $region15: #{tpu_custom_call.1} parent=1 // pred_check_branch
      %407 = sbr.rel (%p405) target = $region17
    $region16: #{tpu_custom_call.1} parent=1 // pred_region
      %v408 = vld [vmem:[#allocation2] sm:$0xff]
      %v409 = vld [vmem:[#allocation2 + $0x8] sm:$0xff]
      %v410 = vld [vmem:[#allocation2 + $0x10] sm:$0xff]
      %v411 = vld [vmem:[#allocation2 + $0x18] sm:$0xff]
      %v412 = vld [vmem:[#allocation2 + $0x20] sm:$0xff]
      %v413 = vld [vmem:[#allocation2 + $0x28] sm:$0xff]
      %v414 = vld [vmem:[#allocation2 + $0x30] sm:$0xff]
      %v415 = vld [vmem:[#allocation2 + $0x38] sm:$0xff]
      %v416 = vld [vmem:[#allocation2 + $0x40] sm:$0xff]
      %v417 = vld [vmem:[#allocation2 + $0x48] sm:$0xff]
      %v418 = vld [vmem:[#allocation2 + $0x50] sm:$0xff]
      %v419 = vld [vmem:[#allocation2 + $0x58] sm:$0xff]
      %v420 = vld [vmem:[#allocation2 + $0x60] sm:$0xff]
      %v421 = vld [vmem:[#allocation2 + $0x68] sm:$0xff]
      %v422 = vld [vmem:[#allocation2 + $0x70] sm:$0xff]
      %v423 = vld [vmem:[#allocation2 + $0x78] sm:$0xff]
      %424 = vst [vmem:[#allocation4] sm:$0xff] %v408
      %425 = vst [vmem:[#allocation4 + $0x8] sm:$0xff] %v409
      %426 = vst [vmem:[#allocation4 + $0x10] sm:$0xff] %v410
      %427 = vst [vmem:[#allocation4 + $0x18] sm:$0xff] %v411
      %428 = vst [vmem:[#allocation4 + $0x20] sm:$0xff] %v412
      %429 = vst [vmem:[#allocation4 + $0x28] sm:$0xff] %v413
      %430 = vst [vmem:[#allocation4 + $0x30] sm:$0xff] %v414
      %431 = vst [vmem:[#allocation4 + $0x38] sm:$0xff] %v415
      %432 = vst [vmem:[#allocation4 + $0x40] sm:$0xff] %v416
      %433 = vst [vmem:[#allocation4 + $0x48] sm:$0xff] %v417
      %434 = vst [vmem:[#allocation4 + $0x50] sm:$0xff] %v418
      %435 = vst [vmem:[#allocation4 + $0x58] sm:$0xff] %v419
      %436 = vst [vmem:[#allocation4 + $0x60] sm:$0xff] %v420
      %437 = vst [vmem:[#allocation4 + $0x68] sm:$0xff] %v421
      %438 = vst [vmem:[#allocation4 + $0x70] sm:$0xff] %v422
      %439 = vst [vmem:[#allocation4 + $0x78] sm:$0xff] %v423
    $region17: #{tpu_custom_call.1} parent=1 // pred_fallthru
      _
    // Predicated region
    $region18: #{tpu_custom_call.1} parent=1 // pred_check
      _
    $region19: #{tpu_custom_call.1} parent=1 // pred_check_branch
      %441 = sbr.rel (0) target = $region21
    $region20: #{tpu_custom_call.1} parent=1 // pred_region
      %s443 = ssub.s32 2048, 2048
      %444 = vsyncadd [#allocation5], %s443
      %s445 = sshll.u32 [#allocation4], 4
      %s446 = int_to_ptr.vmem [resolvable:$true] %s445
      %451 = dma.vmem_to_hbm [thread:$0]  %s446, 2048, %s2, [#allocation5], 128, 128, 8
    $region21: #{tpu_custom_call.1} parent=1 // pred_fallthru
      _
    // Predicated region
    $region22: #{tpu_custom_call.1} parent=1 // pred_check
      _
    $region23: #{tpu_custom_call.1} parent=1 // pred_check_branch
      %453 = sbr.rel (0) target = $region25
    $region24: #{tpu_custom_call.1} parent=1 // pred_region
      %454 = dma.done [#allocation5], 2048
    $region25: #{tpu_custom_call.1} parent=1 // pred_fallthru
      _
    %455 = vsyncpa [#allocation5], 1

</llo_original>
